<compile_context>
chip_gen: v5e
topology: v5e:2x2
jax: 0.10.0
libtpu: 0.0.40
codegen_flags: <defaults>
</compile_context>

<pallas_src>
import numpy as np
import jax
import jax.numpy as jnp
from jax import lax
from jax.experimental import pallas as pl
from jax.experimental.pallas import tpu as pltpu


def _round_up(x, m):
    return (x + m - 1) // m * m


# ---------------------------------------------------------------------------
# Kernel 1: all modality GEUs (one MXU pass) + L2 normalize + MoE-weighted sum
# ---------------------------------------------------------------------------
def _make_modality_kernel(m, bs_pad):
    def kernel(xm_ref, wm_ref, moe_ref, o_ref):
        # One bf16 MXU pass for every modality linear (per-modality bias folded
        # in via a ones column), f32 accumulation.
        y = lax.dot_general(
            xm_ref[...], wm_ref[...], (((1,), (1,)), ((), ())),
            preferred_element_type=jnp.float32)            # (m*bs_pad, L_pad)
        # F.normalize(p=2, dim=1, eps=1e-12): y * rsqrt(max(sum(y^2), eps^2))
        sumsq = jnp.sum(y * y, axis=1, keepdims=True)
        e = y * lax.rsqrt(jnp.maximum(sumsq, 1e-24))
        # MoE weighting (zero on padded rows) then sum over modality groups.
        e = e * moe_ref[...]                               # (m*bs_pad, L_pad)
        acc = e[0:bs_pad, :]                               # groups 16-row aligned
        for g in range(1, m):                              # static tiny loop
            acc = acc + e[g * bs_pad:(g + 1) * bs_pad, :]
        o_ref[...] = acc                                   # (bs_pad, L_pad) f32
    return kernel


# ---------------------------------------------------------------------------
# Kernel 2: per-text-tile GEU + normalize + similarity against mod_w
# ---------------------------------------------------------------------------
def _text_sim_kernel(xt_ref, wt_ref, bt_ref, mw_ref, o_ref):
    # (T_tile, text_dim) bf16 @ (L_pad, text_dim)^T bf16 -> f32, + f32 bias.
    y = lax.dot_general(
        xt_ref[...], wt_ref[...], (((1,), (1,)), ((), ())),
        preferred_element_type=jnp.float32) + bt_ref[...]   # (T_tile, L_pad)
    sumsq = jnp.sum(y * y, axis=1, keepdims=True)
    e = y * lax.rsqrt(jnp.maximum(sumsq, 1e-24))             # f32 normalize
    # sim^T tile: (bs_pad, T_tile) — lane-dense on the (large) text axis.
    o_ref[...] = lax.dot_general(
        mw_ref[...], e, (((1,), (1,)), ((), ())),
        preferred_element_type=jnp.float32)


# ---------------------------------------------------------------------------
# One-time parameter packing (hoisted out of the per-call path)
# ---------------------------------------------------------------------------
def pack_mee_params(params, modality_names, latent_dim):
    m = len(modality_names)
    mod_dims = [int(params["mod"][n][0].shape[1]) for n in modality_names]
    text_dim = int(params["text"][0].shape[1])
    latent_pad = _round_up(latent_dim, 128)            # MXU-aligned N

    offs = [0]
    for d in mod_dims:
        offs.append(offs[-1] + d)
    k_feat = offs[-1]
    km_pad = _round_up(k_feat + m, 128)                # + 1 bias col per modality

    wm = np.zeros((latent_pad, km_pad), np.float32)
    for g, name in enumerate(modality_names):
        w, b = params["mod"][name]
        wm[:latent_dim, offs[g]:offs[g + 1]] = np.asarray(w, np.float32)
        wm[:latent_dim, k_feat + g] = np.asarray(b, np.float32)

    wt, bt = params["text"]
    wt_p = np.zeros((latent_pad, text_dim), np.float32)
    wt_p[:latent_dim, :] = np.asarray(wt, np.float32)
    bt_p = np.zeros((1, latent_pad), np.float32)
    bt_p[0, :latent_dim] = np.asarray(bt, np.float32)

    return dict(
        names=list(modality_names), m=m, mod_dims=mod_dims, offs=offs,
        k_feat=k_feat, km_pad=km_pad, text_dim=text_dim,
        latent=latent_dim, latent_pad=latent_pad,
        wm=jnp.asarray(wm, jnp.bfloat16),   # bf16 operands, f32 accumulation
        wt=jnp.asarray(wt_p, jnp.bfloat16),
        bt=jnp.asarray(bt_p, jnp.float32),  # text bias added in f32 in-kernel
    )


# ---------------------------------------------------------------------------
# Full MEE forward
# ---------------------------------------------------------------------------
def mee_forward(packed, mod, ind, text_uniq):
    names, m = packed["names"], packed["m"]
    offs, k_feat, km_pad = packed["offs"], packed["k_feat"], packed["km_pad"]
    latent_pad, text_dim = packed["latent_pad"], packed["text_dim"]

    bs = int(mod[names[0]].shape[0])
    bs_pad = _round_up(bs, 16)                 # sublane-aligned row groups

    # ---- per-call modality packing (small: (m*bs_pad, km_pad)) ----
    xm = jnp.zeros((m * bs_pad, km_pad), jnp.bfloat16)
    for g, name in enumerate(names):
        r0 = g * bs_pad
        xm = xm.at[r0:r0 + bs, offs[g]:offs[g + 1]].set(
            mod[name].astype(jnp.bfloat16))
        xm = xm.at[r0:r0 + bs, k_feat + g].set(1.0)     # picks up bias b_g

    # moe = avail / sum(avail); the (1/M) factor of the PyTorch code cancels.
    # (An all-zero availability row yields NaN here, matching the reference.)
    avail = jnp.stack([ind[n].astype(jnp.float32) for n in names], axis=1)
    moe = avail / jnp.sum(avail, axis=1, keepdims=True)             # (bs, m)
    moe_rows = jnp.zeros((m * bs_pad, 1), jnp.float32)
    for g in range(m):
        moe_rows = moe_rows.at[g * bs_pad:g * bs_pad + bs, 0].set(moe[:, g])

    mod_w = pl.pallas_call(
        _make_modality_kernel(m, bs_pad),
        out_shape=jax.ShapeDtypeStruct((bs_pad, latent_pad), jnp.float32),
        grid=(1,),
        in_specs=[
            pl.BlockSpec((m * bs_pad, km_pad), lambda i: (0, 0)),
            pl.BlockSpec((latent_pad, km_pad), lambda i: (0, 0)),
            pl.BlockSpec((m * bs_pad, 1), lambda i: (0, 0)),
        ],
        out_specs=pl.BlockSpec((bs_pad, latent_pad), lambda i: (0, 0)),
        compiler_params=pltpu.CompilerParams(
            dimension_semantics=("arbitrary",)),
    )(xm, packed["wm"], moe_rows)

    # ---- text path: tiled over T, parallel grid axis, bf16 text stream ----
    # text K axis stays at text_dim (no zero fill); T padded only up to the
    # tile boundary (at most t_tile-1 zero rows, fused with the bf16 cast).
    t = int(text_uniq.shape[0])
    t_tile = min(512, _round_up(t, 128))       # 512-row tiles at production T
    t_pad = _round_up(t, t_tile)
    xt = text_uniq
    if t_pad != t:
        xt = jnp.pad(xt, ((0, t_pad - t), (0, 0)))
    xt = xt.astype(jnp.bfloat16)

    sim_bt = pl.pallas_call(
        _text_sim_kernel,
        out_shape=jax.ShapeDtypeStruct((bs_pad, t_pad), jnp.float32),
        grid=(t_pad // t_tile,),
        in_specs=[
            pl.BlockSpec((t_tile, text_dim), lambda i: (i, 0)),      # streamed
            pl.BlockSpec((latent_pad, text_dim), lambda i: (0, 0)),  # resident
            pl.BlockSpec((1, latent_pad), lambda i: (0, 0)),         # resident
            pl.BlockSpec((bs_pad, latent_pad), lambda i: (0, 0)),    # resident
        ],
        out_specs=pl.BlockSpec((bs_pad, t_tile), lambda i: (0, i)),
        compiler_params=pltpu.CompilerParams(
            dimension_semantics=("parallel",),    # v7x: 2 TCs split the tiles
            vmem_limit_bytes=32 * 1024 * 1024),   # fits v7x 64 MiB w/ headroom
    )(xt, packed["wt"], packed["bt"], mod_w)

    # Module contract is (T, bs).  The kernel's (bs, T) layout is the
    # lane-dense one; consumers that can accept (bs, T) should skip this.
    # TODO(synk): expose a (bs, T) output option to save one HBM pass.
    return sim_bt[:bs, :t].T


# ---------------------------------------------------------------------------
# Pure-JAX reference mirroring the PyTorch module (for verification)
# ---------------------------------------------------------------------------
def reference_forward(mod, ind, text_uniq, params, modality_names,
                      bf16_operands=True):
    # bf16_operands=True applies the same operand quantization as the kernel
    # (bf16 inputs/weights/modality biases; f32 text bias; f32 accumulation).
    if bf16_operands:
        q = lambda a: a.astype(jnp.bfloat16).astype(jnp.float32)
    else:
        q = lambda a: a

    def geu(x, w, b):
        y = x @ w.T + b
        n = jnp.maximum(jnp.linalg.norm(y, axis=1, keepdims=True), 1e-12)
        return y / n

    embds = {n: geu(q(mod[n]), q(params["mod"][n][0]), q(params["mod"][n][1]))
             for n in modality_names}
    text_embd = geu(q(text_uniq), q(params["text"][0]), params["text"][1])

    t = text_uniq.shape[0]
    m = len(modality_names)
    available = jnp.stack([ind[n] for n in modality_names], axis=1)   # (bs, M)
    moe = jnp.ones((t, m)) * (1.0 / m)
    moe = available[None, :, :] * moe[:, None, :]                     # (T,bs,M)
    moe = moe / jnp.sum(moe, axis=2, keepdims=True)
    sim = jnp.zeros((t, available.shape[0]))
    for i, n in enumerate(modality_names):
        sim = sim + moe[:, :, i] * (text_embd @ embds[n].T)
    return sim


if __name__ == "__main__":
    # Small, MEE-consistent shapes.
    mod_dims = {"audio": 16, "video": 24}
    modality_names = list(mod_dims.keys())
    text_dim = 20
    latent_dim = 32
    bs = 4
    n_text = 8

    key = jax.random.PRNGKey(0)
    keys = jax.random.split(key, 16)
    k = iter(keys)

    # Deterministic parameter init (PyTorch Linear shapes: W (out, in), b (out,)).
    params = {"mod": {}, "text": None}
    for name in modality_names:
        w = jax.random.normal(next(k), (latent_dim, mod_dims[name]), jnp.float32) * 0.1
        b = jax.random.normal(next(k), (latent_dim,), jnp.float32) * 0.01
        params["mod"][name] = (w, b)
    wt = jax.random.normal(next(k), (latent_dim, text_dim), jnp.float32) * 0.1
    bt = jax.random.normal(next(k), (latent_dim,), jnp.float32) * 0.01
    params["text"] = (wt, bt)

    # Inputs.
    mod = {name: jax.random.normal(next(k), (bs, mod_dims[name]), jnp.float32)
           for name in modality_names}
    # Availability indicators (no all-zero row; an all-zero row would NaN in
    # both this kernel and the PyTorch reference).
    ind = {"audio": jnp.array([1.0, 1.0, 0.0, 1.0], jnp.float32),
           "video": jnp.array([1.0, 0.0, 1.0, 1.0], jnp.float32)}
    text_uniq = jax.random.normal(next(k), (n_text, text_dim), jnp.float32)

    packed = pack_mee_params(params, modality_names, latent_dim)  # once per model
    sim = mee_forward(packed, mod, ind, text_uniq)
    sim = jax.block_until_ready(sim)

    ref = reference_forward(mod, ind, text_uniq, params, modality_names,
                            bf16_operands=True)
    np.testing.assert_allclose(np.asarray(sim), np.asarray(ref),
                               rtol=1e-3, atol=1e-3)

    print("KERNEL_OK")
</pallas_src>

<mosaic_0001>
module attributes {stable_mosaic.version = 11 : i64} {
  func.func @kernel(%arg0: i32, %arg1: memref<32x128xbf16, #tpu.memory_space<vmem>>, %arg2: memref<128x128xbf16, #tpu.memory_space<vmem>>, %arg3: memref<32x1xf32, #tpu.memory_space<vmem>>, %arg4: memref<16x128xf32, #tpu.memory_space<vmem>>) attributes {dimension_semantics = [#tpu.dimension_semantics<arbitrary>], iteration_bounds = array<i64: 1>, scalar_prefetch = 0 : i64, scratch_operands = 0 : i64, tpu.core_type = #tpu.core_type<tc>, window_params = [{pipeline_mode = #tpu.pipeline_mode<synchronous>, transform_indices = @transform_0, window_bounds = array<i64: 32, 128>}, {pipeline_mode = #tpu.pipeline_mode<synchronous>, transform_indices = @transform_1, window_bounds = array<i64: 128, 128>}, {pipeline_mode = #tpu.pipeline_mode<synchronous>, transform_indices = @transform_2, window_bounds = array<i64: 32, 1>}, {pipeline_mode = #tpu.pipeline_mode<synchronous>, transform_indices = @transform_3, window_bounds = array<i64: 16, 128>}]} {
    %c0 = arith.constant 0 : index
    %c0_0 = arith.constant 0 : index
    %0 = vector.load %arg1[%c0, %c0_0] : memref<32x128xbf16, #tpu.memory_space<vmem>>, vector<32x128xbf16>
    %c0_1 = arith.constant 0 : index
    %c0_2 = arith.constant 0 : index
    %1 = vector.load %arg2[%c0_1, %c0_2] : memref<128x128xbf16, #tpu.memory_space<vmem>>, vector<128x128xbf16>
    %cst = arith.constant dense<0.000000e+00> : vector<32x128xf32>
    %2 = tpu.matmul %0, %1, %cst {dimension_numbers = #tpu.dot_dimension_numbers<[1], [1], [0], [0], [0, 0, 1, 0], [], []>} : vector<32x128xbf16>, vector<128x128xbf16>, vector<32x128xf32> -> vector<32x128xf32>
    %3 = arith.mulf %2, %2 : vector<32x128xf32>
    %cst_3 = arith.constant dense<0.000000e+00> : vector<32xf32>
    %4 = vector.multi_reduction <add>, %3, %cst_3 [1] : vector<32x128xf32> to vector<32xf32>
    %5 = vector.shape_cast %4 : vector<32xf32> to vector<32x1xf32>
    %cst_4 = arith.constant 1.000000e-24 : f32
    %6 = vector.broadcast %cst_4 : f32 to vector<32x1xf32>
    %7 = arith.maximumf %5, %6 : vector<32x1xf32>
    %8 = math.rsqrt %7 : vector<32x1xf32>
    %9 = vector.broadcast %8 : vector<32x1xf32> to vector<32x128xf32>
    %10 = arith.mulf %2, %9 : vector<32x128xf32>
    %c0_5 = arith.constant 0 : index
    %c0_6 = arith.constant 0 : index
    %11 = vector.load %arg3[%c0_5, %c0_6] : memref<32x1xf32, #tpu.memory_space<vmem>>, vector<32x1xf32>
    %12 = vector.broadcast %11 : vector<32x1xf32> to vector<32x128xf32>
    %13 = arith.mulf %10, %12 : vector<32x128xf32>
    %14 = vector.extract_strided_slice %13 {offsets = [0, 0], sizes = [16, 128], strides = [1, 1]} : vector<32x128xf32> to vector<16x128xf32>
    %15 = vector.extract_strided_slice %13 {offsets = [16, 0], sizes = [16, 128], strides = [1, 1]} : vector<32x128xf32> to vector<16x128xf32>
    %16 = arith.addf %14, %15 : vector<16x128xf32>
    %c0_7 = arith.constant 0 : index
    %c0_8 = arith.constant 0 : index
    %17 = vector.load %arg4[%c0_7, %c0_8] : memref<16x128xf32, #tpu.memory_space<vmem>>, vector<16x128xf32>
    tpu.vector_store %arg4[%c0_7, %c0_8], %16 {strides = array<i32>} : memref<16x128xf32, #tpu.memory_space<vmem>>, vector<16x128xf32>,
    return
  }
  func.func @transform_0(%arg0: i32) -> (i32, i32) {
    %c0_i32 = arith.constant 0 : i32
    %c0_i32_0 = arith.constant 0 : i32
    %c0_i32_1 = arith.constant 0 : i32
    return %c0_i32, %c0_i32_0 : i32, i32
  }
  func.func @transform_1(%arg0: i32) -> (i32, i32) {
    %c0_i32 = arith.constant 0 : i32
    %c0_i32_0 = arith.constant 0 : i32
    %c0_i32_1 = arith.constant 0 : i32
    return %c0_i32, %c0_i32_0 : i32, i32
  }
  func.func @transform_2(%arg0: i32) -> (i32, i32) {
    %c0_i32 = arith.constant 0 : i32
    %c0_i32_0 = arith.constant 0 : i32
    %c0_i32_1 = arith.constant 0 : i32
    return %c0_i32, %c0_i32_0 : i32, i32
  }
  func.func @transform_3(%arg0: i32) -> (i32, i32) {
    %c0_i32 = arith.constant 0 : i32
    %c0_i32_0 = arith.constant 0 : i32
    %c0_i32_1 = arith.constant 0 : i32
    return %c0_i32, %c0_i32_0 : i32, i32
  }
}

</mosaic_0001>

<llo_original>
// kernel: tpu_custom_call.1
$region0: #{tpu_custom_call.1}
  #allocation0 [shape = 'u32[]', space=smem, size = 0x4, offset = 0x4, fixed_abs, tag = 'smem constant byte address 0x4 - core index']
  #allocation1 [shape = 'u32[72,128]{1,0:T(1,128)}', space=vmem, size = 0x9000, scoped, tag = 'internal scratch']
  %s0 = inlined_call_operand.vmem [shape: bf16[32,128], index: 0, kind: input, shape index: {}]
  %s1 = inlined_call_operand.hbm [shape: bf16[128,128], index: 1, kind: input, shape index: {}]
  %s2 = inlined_call_operand.vmem [shape: f32[32,1], index: 2, kind: input, shape index: {}]
  %s3 = inlined_call_operand.hbm [shape: f32[16,128], index: 3, kind: output, shape index: {}]
  %s4 = sld [smem:[#allocation0]]
  $region26: #{tpu_custom_call.1} parent=0
    _
  %s6 = ssub.s32 1, %s4
  %s7 = scalar_select 0, %s6, %s4
  $region1: #{tpu_custom_call.1} parent=0
    #allocation2 [shape = 'u8[32768]{0}', space=vmem, size = 0x8000, scoped, tag = 'input window, operand 1, single buffered']
    #allocation3 [shape = 's32[1]{0}', space=sflag, size = 0x4, scoped, tag = 'scoped memory for tpu_custom_call.1']
    #allocation4 [shape = 's32[1]{0}', space=sflag, size = 0x4, scoped, tag = 'scoped memory for tpu_custom_call.1']
    #allocation5 [shape = 'u8[8192]{0}', space=vmem, size = 0x2000, scoped, tag = 'output window, operand 0, single buffered']
    %8 = vsyncpa [#allocation3], 0
    %9 = vsyncpa [#allocation4], 0
    // Predicated region
    $region2: #{tpu_custom_call.1} parent=1 // pred_check
      _
    $region3: #{tpu_custom_call.1} parent=1 // pred_check_branch
      %11 = sbr.rel (0) target = $region5
    $region4: #{tpu_custom_call.1} parent=1 // pred_region
      _
    $region5: #{tpu_custom_call.1} parent=1 // pred_fallthru
      _
    // Predicated region
    $region6: #{tpu_custom_call.1} parent=1 // pred_check
      _
    $region7: #{tpu_custom_call.1} parent=1 // pred_check_branch
      %13 = sbr.rel (0) target = $region9
    $region8: #{tpu_custom_call.1} parent=1 // pred_region
      %15 = vsyncadd [#allocation3], 0
      %s16 = sshll.u32 %s1, 4
      %s17 = int_to_ptr.hbm [resolvable:$true] %s16
      %s18 = sshll.u32 [#allocation2], 4
      %s19 = int_to_ptr.vmem [resolvable:$true] %s18
      %24 = dma.hbm_to_vmem [thread:$0]  %s17, 1024, %s19, [#allocation3], 64, 64, 4
    $region9: #{tpu_custom_call.1} parent=1 // pred_fallthru
      _
    // Predicated region
    $region10: #{tpu_custom_call.1} parent=1 // pred_check
      _
    $region11: #{tpu_custom_call.1} parent=1 // pred_check_branch
      %26 = sbr.rel (0) target = $region13
    $region12: #{tpu_custom_call.1} parent=1 // pred_region
      _
    $region13: #{tpu_custom_call.1} parent=1 // pred_fallthru
      _
    // Predicated region
    $region14: #{tpu_custom_call.1} parent=1 // pred_check
      _
    $region15: #{tpu_custom_call.1} parent=1 // pred_check_branch
      %28 = sbr.rel (0) target = $region17
    $region16: #{tpu_custom_call.1} parent=1 // pred_region
      %30 = dma.done [#allocation3], 1024
    $region17: #{tpu_custom_call.1} parent=1 // pred_fallthru
      _
    %v31 = vld [vmem:[%s0] sm:$0xf]
    %v32 = vld [vmem:[%s0 + $0x4] sm:$0xf]
    %v33 = vld [vmem:[%s0 + $0x8] sm:$0xf]
    %v34 = vld [vmem:[%s0 + $0xc] sm:$0xf]
    %v35 = vld [vmem:[#allocation2] sm:$0xf]
    %v36 = vld [vmem:[#allocation2 + $0x4] sm:$0xf]
    %v37 = vld [vmem:[#allocation2 + $0x8] sm:$0xf]
    %v38 = vld [vmem:[#allocation2 + $0xc] sm:$0xf]
    %v39 = vld [vmem:[#allocation2 + $0x10] sm:$0xf]
    %v40 = vld [vmem:[#allocation2 + $0x14] sm:$0xf]
    %v41 = vld [vmem:[#allocation2 + $0x18] sm:$0xf]
    %v42 = vld [vmem:[#allocation2 + $0x1c] sm:$0xf]
    %v43 = vld [vmem:[#allocation2 + $0x20] sm:$0xf]
    %v44 = vld [vmem:[#allocation2 + $0x24] sm:$0xf]
    %v45 = vld [vmem:[#allocation2 + $0x28] sm:$0xf]
    %v46 = vld [vmem:[#allocation2 + $0x2c] sm:$0xf]
    %v47 = vld [vmem:[#allocation2 + $0x30] sm:$0xf]
    %v48 = vld [vmem:[#allocation2 + $0x34] sm:$0xf]
    %v49 = vld [vmem:[#allocation2 + $0x38] sm:$0xf]
    %v50 = vld [vmem:[#allocation2 + $0x3c] sm:$0xf]
    %v55 = vunpack.c.l.b16 %v31
    %v56 = vunpack.c.l.b16 %v32
    %v57 = vunpack.c.l.b16 %v33
    %v58 = vunpack.c.l.b16 %v34
    %v59 = vpack.c.b16 %v56, %v55
    %v60 = vpack.c.b16 %v58, %v57
    %v79 = vunpack.c.l.b16 %v35
    %v80 = vunpack.c.l.b16 %v36
    %v81 = vunpack.c.l.b16 %v37
    %v82 = vunpack.c.l.b16 %v38
    %v83 = vunpack.c.l.b16 %v39
    %v84 = vunpack.c.l.b16 %v40
    %v85 = vunpack.c.l.b16 %v41
    %v86 = vunpack.c.l.b16 %v42
    %v87 = vunpack.c.l.b16 %v43
    %v88 = vunpack.c.l.b16 %v44
    %v89 = vunpack.c.l.b16 %v45
    %v90 = vunpack.c.l.b16 %v46
    %v91 = vunpack.c.l.b16 %v47
    %v92 = vunpack.c.l.b16 %v48
    %v93 = vunpack.c.l.b16 %v49
    %v94 = vunpack.c.l.b16 %v50
    %v95 = vpack.c.b16 %v80, %v79
    %v96 = vpack.c.b16 %v82, %v81
    %v97 = vpack.c.b16 %v84, %v83
    %v98 = vpack.c.b16 %v86, %v85
    %v99 = vpack.c.b16 %v88, %v87
    %v100 = vpack.c.b16 %v90, %v89
    %v101 = vpack.c.b16 %v92, %v91
    %v102 = vpack.c.b16 %v94, %v93
    %111 = vmatpush.bf16.xpose.msra.mxu0 %v102
    %112 = vmatpush.bf16.xpose.msra.mxu0 %v101
    %113 = vmatpush.bf16.xpose.msra.mxu0 %v100
    %114 = vmatpush.bf16.xpose.msra.mxu0 %v99
    %115 = vmatpush.bf16.xpose.msra.mxu0 %v98
    %116 = vmatpush.bf16.xpose.msra.mxu0 %v97
    %117 = vmatpush.bf16.xpose.msra.mxu0 %v96
    %118 = vmatpush.bf16.xpose.msra.mxu0 %v95
    %119 = vmatmul.bf16.gmra.mxu0 %v59
    %v120 = vpop.f32.mrf.mxu0
    %v121 = vadd.f32 0.0, %v120
    %v122 = vpop.f32.mrf.mxu0
    %v123 = vadd.f32 0.0, %v122
    %124 = vmatmul.bf16.gmra.mxu0 %v60
    %v125 = vpop.f32.mrf.mxu0
    %v126 = vadd.f32 0.0, %v125
    %v127 = vpop.f32.mrf.mxu0
    %v128 = vadd.f32 0.0, %v127
    %129 = vdwg.mxu0
    %v130 = vmul.f32 %v121, %v121
    %v131 = vmul.f32 %v123, %v123
    %v132 = vmul.f32 %v126, %v126
    %v133 = vmul.f32 %v128, %v128
    %134 = vadd.xlane.f32.xlu0 %v130
    %v135 = vpop.xlane.xlu0 %134
    %136 = vadd.xlane.f32.xlu0 %v131
    %v137 = vpop.xlane.xlu0 %136
    %138 = vadd.xlane.f32.xlu0 %v132
    %v139 = vpop.xlane.xlu0 %138
    %140 = vadd.xlane.f32.xlu0 %v133
    %v141 = vpop.xlane.xlu0 %140
    %v142 = vmax.f32 %v135, 1e-24
    %v143 = vmax.f32 %v137, 1e-24
    %v144 = vmax.f32 %v139, 1e-24
    %v145 = vmax.f32 %v141, 1e-24
    %v146 = vrsqrt.pop %v142
    %v147 = vmul.f32 %v146, %v142
    %v148 = vmul.f32 %v147, %v146
    %v149 = vmul.f32 0.5, %v148
    %v150 = vsub.f32 1.5, %v149
    %v151 = vmul.f32 %v146, %v150
    %vm152 = vweird.f32 %v142
    %vm153 = vweird.f32 %v146
    %vm154 = vmor %vm152, %vm153
    %v155 = vsel %vm154, %v146, %v151
    %v156 = vrsqrt.pop %v143
    %v157 = vmul.f32 %v156, %v143
    %v158 = vmul.f32 %v157, %v156
    %v159 = vmul.f32 0.5, %v158
    %v160 = vsub.f32 1.5, %v159
    %v161 = vmul.f32 %v156, %v160
    %vm162 = vweird.f32 %v143
    %vm163 = vweird.f32 %v156
    %vm164 = vmor %vm162, %vm163
    %v165 = vsel %vm164, %v156, %v161
    %v166 = vrsqrt.pop %v144
    %v167 = vmul.f32 %v166, %v144
    %v168 = vmul.f32 %v167, %v166
    %v169 = vmul.f32 0.5, %v168
    %v170 = vsub.f32 1.5, %v169
    %v171 = vmul.f32 %v166, %v170
    %vm172 = vweird.f32 %v144
    %vm173 = vweird.f32 %v166
    %vm174 = vmor %vm172, %vm173
    %v175 = vsel %vm174, %v166, %v171
    %v176 = vrsqrt.pop %v145
    %v177 = vmul.f32 %v176, %v145
    %v178 = vmul.f32 %v177, %v176
    %v179 = vmul.f32 0.5, %v178
    %v180 = vsub.f32 1.5, %v179
    %v181 = vmul.f32 %v176, %v180
    %vm182 = vweird.f32 %v145
    %vm183 = vweird.f32 %v176
    %vm184 = vmor %vm182, %vm183
    %v185 = vsel %vm184, %v176, %v181
    %v186 = vmul.f32 %v121, %v155
    %v187 = vmul.f32 %v123, %v165
    %v188 = vmul.f32 %v126, %v175
    %v189 = vmul.f32 %v128, %v185
    %v190 = vld [vmem:[%s2] sm:$0xff]
    %v191 = vld [vmem:[%s2 + $0x8] sm:$0xff]
    %v192 = vld [vmem:[%s2 + $0x10] sm:$0xff]
    %v193 = vld [vmem:[%s2 + $0x18] sm:$0xff]
    %195 = vset.pattern.permute.xlu0 0
    %196 = vperm.xlu0 %195, %v190
    %v197 = vpop.permute.xlu0 %196
    %200 = vset.pattern.permute.xlu0 0
    %201 = vperm.xlu0 %200, %v191
    %v202 = vpop.permute.xlu0 %201
    %205 = vset.pattern.permute.xlu0 0
    %206 = vperm.xlu0 %205, %v192
    %v207 = vpop.permute.xlu0 %206
    %210 = vset.pattern.permute.xlu0 0
    %211 = vperm.xlu0 %210, %v193
    %v212 = vpop.permute.xlu0 %211
    %v214 = vmul.f32 %v186, %v197
    %v215 = vmul.f32 %v187, %v202
    %v216 = vmul.f32 %v188, %v207
    %v217 = vmul.f32 %v189, %v212
    %v218 = vadd.f32 %v214, %v216
    %v219 = vadd.f32 %v215, %v217
    %220 = vst [vmem:[#allocation5] sm:$0xff] %v218
    %221 = vst [vmem:[#allocation5 + $0x8] sm:$0xff] %v219
    // Predicated region
    $region18: #{tpu_custom_call.1} parent=1 // pred_check
      _
    $region19: #{tpu_custom_call.1} parent=1 // pred_check_branch
      %223 = sbr.rel (0) target = $region21
    $region20: #{tpu_custom_call.1} parent=1 // pred_region
      %225 = vsyncadd [#allocation4], 0
      %s226 = sshll.u32 [#allocation5], 4
      %s227 = int_to_ptr.vmem [resolvable:$true] %s226
      %s228 = sshll.u32 %s3, 4
      %s229 = int_to_ptr.hbm [resolvable:$true] %s228
      %234 = dma.vmem_to_hbm [thread:$0]  %s227, 256, %s229, [#allocation4], 128, 128, 8
    $region21: #{tpu_custom_call.1} parent=1 // pred_fallthru
      _
    // Predicated region
    $region22: #{tpu_custom_call.1} parent=1 // pred_check
      _
    $region23: #{tpu_custom_call.1} parent=1 // pred_check_branch
      %236 = sbr.rel (0) target = $region25
    $region24: #{tpu_custom_call.1} parent=1 // pred_region
      %238 = dma.done [#allocation4], 256
    $region25: #{tpu_custom_call.1} parent=1 // pred_fallthru
      _
    %239 = vsyncpa [#allocation3], 1
    %240 = vsyncpa [#allocation4], 1

</llo_original>
